<compile_context>
chip_gen: v6e
topology: v6e:2x2x1
jax: 0.10.0
libtpu: 0.0.40
codegen_flags: <defaults>
</compile_context>

<pallas_src>
import jax
import jax.numpy as jnp
from jax.experimental import pallas as pl
from jax.experimental.pallas import tpu as pltpu

IN_FEATURES = 4
HIDDEN = 128
NUM_ACTIONS = 2
MAX_BLOCK_COLS = 512  # (128, 512) f32 hidden tile = 256 KB; lane-dense DMAs


def policy_kernel(x_ref, w1_ref, b1_ref, dw2_ref, db2_ref, out_ref):
    # x_ref:   (4, C)    feature-major batch tile of states
    # w1_ref:  (128, 4)  fc1.weight (PyTorch layout), VMEM-resident
    # b1_ref:  (128, 1)  fc1.bias
    # dw2_ref: (128, 1)  fc2.weight[1] - fc2.weight[0]
    # db2_ref: (1,)      fc2.bias[1] - fc2.bias[0]   (SMEM scalar)
    # out_ref: (2, C)    row 0 = p(a=0), row 1 = p(a=1)
    x = x_ref[...]                               # (4, C)
    w1 = w1_ref[...]                             # (128, 4)

    # ---- fc1 + ReLU on the VPU: h = relu(W1 @ x + b1), 4 broadcast FMAs ----
    h = b1_ref[...]                              # (128, 1) -> broadcasts
    for k in range(IN_FEATURES):                 # static unroll (4 iters)
        h = h + w1[:, k:k + 1] * x[k:k + 1, :]   # (128,1)*(1,C) -> (128,C)
    h = jnp.maximum(h, 0.0)                      # (128, C)

    # ---- fc2 + 2-way softmax fused: one sublane (XLU) reduction ----
    delta = jnp.sum(h * dw2_ref[...], axis=0, keepdims=True) + db2_ref[0]  # (1, C)

    # p1 = sigmoid(delta), p0 = 1 - p1  => exactly normalized, no approx recip
    p1 = 1.0 / (1.0 + jnp.exp(-delta))           # one EUP exp
    p0 = 1.0 - p1

    out_ref[...] = jnp.concatenate([p0, p1], axis=0)   # (2, C), lane-dense


def policy_forward(x, fc1_w, fc1_b, fc2_w, fc2_b, *, block_cols=None):
    """Batched Policy.forward.

    x:     (T, 4)   f32  -- T independent CartPole states (one per timestep)
    fc1_w: (128, 4) f32  -- fc1.weight (PyTorch out_features x in_features)
    fc1_b: (128,)   f32  -- fc1.bias
    fc2_w: (2, 128) f32  -- fc2.weight
    fc2_b: (2,)     f32  -- fc2.bias
    returns (T, 2) action probabilities (each row sums to 1 exactly).
    """
    T = x.shape[0]

    # Feature-major layout for lane-dense DMA.  (In a real rollout buffer the
    # states would be stored (4, T) to begin with; this transpose is tiny.)
    xT = x.T.astype(jnp.float32)                       # (4, T)
    b1 = fc1_b.reshape(HIDDEN, 1).astype(jnp.float32)
    dw2 = (fc2_w[1] - fc2_w[0]).reshape(HIDDEN, 1).astype(jnp.float32)
    db2 = (fc2_b[1] - fc2_b[0]).reshape(1).astype(jnp.float32)

    if block_cols is None:
        # Aim for >= 2 lane-dense blocks (feeds both v7x TensorCores); cap the
        # block so the hidden tile stays small.  Extra grid steps cost only
        # ~0.35 us each on the single-TC v5e/v6e.
        half = pl.cdiv(T, 2)
        block_cols = min(MAX_BLOCK_COLS, pl.cdiv(half, 128) * 128)
    block_cols = max(128, block_cols)

    n_blocks = pl.cdiv(T, block_cols)
    Tp = n_blocks * block_cols
    if Tp != T:
        # Padded columns produce bias-only probabilities and are sliced off
        # below; never reduce over the padded region.
        xT = jnp.pad(xT, ((0, 0), (0, Tp - T)))

    out_padded = pl.pallas_call(
        policy_kernel,
        out_shape=jax.ShapeDtypeStruct((NUM_ACTIONS, Tp), jnp.float32),
        grid=(n_blocks,),
        in_specs=[
            # activations: one lane-dense column tile per grid step
            pl.BlockSpec((IN_FEATURES, block_cols), lambda i: (0, i)),
            # weights/biases: constant index_map -> fetched once, VMEM-resident
            pl.BlockSpec((HIDDEN, IN_FEATURES), lambda i: (0, 0)),
            pl.BlockSpec((HIDDEN, 1), lambda i: (0, 0)),
            pl.BlockSpec((HIDDEN, 1), lambda i: (0, 0)),
            # scalar bias delta lives in SMEM
            pl.BlockSpec(memory_space=pltpu.MemorySpace.SMEM),
        ],
        out_specs=pl.BlockSpec((NUM_ACTIONS, block_cols), lambda i: (0, i)),
        compiler_params=pltpu.CompilerParams(
            dimension_semantics=("parallel",),   # shards across v7x's 2 TCs
        ),
    )(xT, fc1_w.astype(jnp.float32), b1, dw2, db2)

    # (2, Tp) lane-dense slab -> (T, 2) probabilities
    return out_padded[:, :T].T


def init_params(key):
    """PyTorch nn.Linear default init: U[-1/sqrt(fan_in), +1/sqrt(fan_in)]."""
    k1, k2, k3, k4 = jax.random.split(key, 4)
    bound1 = 1.0 / jnp.sqrt(float(IN_FEATURES))
    bound2 = 1.0 / jnp.sqrt(float(HIDDEN))
    fc1_w = jax.random.uniform(k1, (HIDDEN, IN_FEATURES), jnp.float32, -bound1, bound1)
    fc1_b = jax.random.uniform(k2, (HIDDEN,), jnp.float32, -bound1, bound1)
    fc2_w = jax.random.uniform(k3, (NUM_ACTIONS, HIDDEN), jnp.float32, -bound2, bound2)
    fc2_b = jax.random.uniform(k4, (NUM_ACTIONS,), jnp.float32, -bound2, bound2)
    return fc1_w, fc1_b, fc2_w, fc2_b


def reference_forward(x, fc1_w, fc1_b, fc2_w, fc2_b):
    """Pure-JAX reference: Policy.forward applied independently to each row
    (softmax(dim=0) of a 1-D input == softmax over the 2 actions)."""
    h = jnp.maximum(x @ fc1_w.T + fc1_b[None, :], 0.0)
    logits = h @ fc2_w.T + fc2_b[None, :]
    return jax.nn.softmax(logits, axis=-1)


# TODO(synk): train_net (Adam update / backward), put_data and Categorical
# action sampling are training-side logic with no forward-pass Pallas
# equivalent; only forward() is implemented here.

if __name__ == "__main__":
    key = jax.random.PRNGKey(0)
    kx, kp = jax.random.split(key)

    T = 256                                   # batched timesteps (small demo)
    x = jax.random.normal(kx, (T, IN_FEATURES), jnp.float32)
    fc1_w, fc1_b, fc2_w, fc2_b = init_params(kp)

    out = policy_forward(x, fc1_w, fc1_b, fc2_w, fc2_b)
    out = jax.block_until_ready(out)

    ref = reference_forward(x, fc1_w, fc1_b, fc2_w, fc2_b)
    assert out.shape == (T, NUM_ACTIONS)
    assert jnp.allclose(out, ref, atol=1e-4, rtol=1e-4)
    # exact normalization: each row is a distribution over the 2 actions
    assert jnp.allclose(jnp.sum(out, axis=-1), jnp.ones((T,)), atol=1e-6)

    print("KERNEL_OK")
</pallas_src>

<mosaic_0001>
module attributes {stable_mosaic.version = 11 : i64} {
  func.func @policy_kernel(%arg0: i32, %arg1: memref<4x128xf32, #tpu.memory_space<vmem>>, %arg2: memref<128x4xf32, #tpu.memory_space<vmem>>, %arg3: memref<128x1xf32, #tpu.memory_space<vmem>>, %arg4: memref<128x1xf32, #tpu.memory_space<vmem>>, %arg5: memref<1xf32, #tpu.memory_space<smem>>, %arg6: memref<2x128xf32, #tpu.memory_space<vmem>>) attributes {dimension_semantics = [#tpu.dimension_semantics<parallel>], iteration_bounds = array<i64: 2>, scalar_prefetch = 0 : i64, scratch_operands = 0 : i64, tpu.core_type = #tpu.core_type<tc>, window_params = [{transform_indices = @transform_0, window_bounds = array<i64: 4, 128>}, {pipeline_mode = #tpu.pipeline_mode<synchronous>, transform_indices = @transform_1, window_bounds = array<i64: 128, 4>}, {pipeline_mode = #tpu.pipeline_mode<synchronous>, transform_indices = @transform_2, window_bounds = array<i64: 128, 1>}, {pipeline_mode = #tpu.pipeline_mode<synchronous>, transform_indices = @transform_3, window_bounds = array<i64: 128, 1>}, {transform_indices = @transform_4, window_bounds = array<i64: 1>}, {transform_indices = @transform_5, window_bounds = array<i64: 2, 128>}]} {
    %c0 = arith.constant 0 : index
    %c0_0 = arith.constant 0 : index
    %0 = vector.load %arg1[%c0, %c0_0] : memref<4x128xf32, #tpu.memory_space<vmem>>, vector<4x128xf32>
    %c0_1 = arith.constant 0 : index
    %c0_2 = arith.constant 0 : index
    %1 = vector.load %arg2[%c0_1, %c0_2] : memref<128x4xf32, #tpu.memory_space<vmem>>, vector<128x4xf32>
    %c0_3 = arith.constant 0 : index
    %c0_4 = arith.constant 0 : index
    %2 = vector.load %arg3[%c0_3, %c0_4] : memref<128x1xf32, #tpu.memory_space<vmem>>, vector<128x1xf32>
    %3 = vector.extract_strided_slice %1 {offsets = [0, 0], sizes = [128, 1], strides = [1, 1]} : vector<128x4xf32> to vector<128x1xf32>
    %4 = vector.extract_strided_slice %0 {offsets = [0, 0], sizes = [1, 128], strides = [1, 1]} : vector<4x128xf32> to vector<1x128xf32>
    %5 = vector.broadcast %3 : vector<128x1xf32> to vector<128x128xf32>
    %6 = vector.broadcast %4 : vector<1x128xf32> to vector<128x128xf32>
    %7 = arith.mulf %5, %6 : vector<128x128xf32>
    %8 = vector.broadcast %2 : vector<128x1xf32> to vector<128x128xf32>
    %9 = arith.addf %8, %7 : vector<128x128xf32>
    %10 = vector.extract_strided_slice %1 {offsets = [0, 1], sizes = [128, 1], strides = [1, 1]} : vector<128x4xf32> to vector<128x1xf32>
    %11 = vector.extract_strided_slice %0 {offsets = [1, 0], sizes = [1, 128], strides = [1, 1]} : vector<4x128xf32> to vector<1x128xf32>
    %12 = vector.broadcast %10 : vector<128x1xf32> to vector<128x128xf32>
    %13 = vector.broadcast %11 : vector<1x128xf32> to vector<128x128xf32>
    %14 = arith.mulf %12, %13 : vector<128x128xf32>
    %15 = arith.addf %9, %14 : vector<128x128xf32>
    %16 = vector.extract_strided_slice %1 {offsets = [0, 2], sizes = [128, 1], strides = [1, 1]} : vector<128x4xf32> to vector<128x1xf32>
    %17 = vector.extract_strided_slice %0 {offsets = [2, 0], sizes = [1, 128], strides = [1, 1]} : vector<4x128xf32> to vector<1x128xf32>
    %18 = vector.broadcast %16 : vector<128x1xf32> to vector<128x128xf32>
    %19 = vector.broadcast %17 : vector<1x128xf32> to vector<128x128xf32>
    %20 = arith.mulf %18, %19 : vector<128x128xf32>
    %21 = arith.addf %15, %20 : vector<128x128xf32>
    %22 = vector.extract_strided_slice %1 {offsets = [0, 3], sizes = [128, 1], strides = [1, 1]} : vector<128x4xf32> to vector<128x1xf32>
    %23 = vector.extract_strided_slice %0 {offsets = [3, 0], sizes = [1, 128], strides = [1, 1]} : vector<4x128xf32> to vector<1x128xf32>
    %24 = vector.broadcast %22 : vector<128x1xf32> to vector<128x128xf32>
    %25 = vector.broadcast %23 : vector<1x128xf32> to vector<128x128xf32>
    %26 = arith.mulf %24, %25 : vector<128x128xf32>
    %27 = arith.addf %21, %26 : vector<128x128xf32>
    %cst = arith.constant 0.000000e+00 : f32
    %28 = vector.broadcast %cst : f32 to vector<128x128xf32>
    %29 = arith.maximumf %27, %28 : vector<128x128xf32>
    %c0_5 = arith.constant 0 : index
    %c0_6 = arith.constant 0 : index
    %30 = vector.load %arg4[%c0_5, %c0_6] : memref<128x1xf32, #tpu.memory_space<vmem>>, vector<128x1xf32>
    %31 = vector.broadcast %30 : vector<128x1xf32> to vector<128x128xf32>
    %32 = arith.mulf %29, %31 : vector<128x128xf32>
    %cst_7 = arith.constant dense<0.000000e+00> : vector<128xf32>
    %33 = vector.multi_reduction <add>, %32, %cst_7 [0] : vector<128x128xf32> to vector<128xf32>
    %34 = vector.shape_cast %33 : vector<128xf32> to vector<1x128xf32>
    %c0_8 = arith.constant 0 : index
    %35 = memref.load %arg5[%c0_8] : memref<1xf32, #tpu.memory_space<smem>>
    %36 = vector.broadcast %35 : f32 to vector<1x128xf32>
    %37 = arith.addf %34, %36 : vector<1x128xf32>
    %cst_9 = arith.constant 0.000000e+00 : f32
    %38 = vector.broadcast %cst_9 : f32 to vector<1x128xf32>
    %39 = arith.subf %38, %37 : vector<1x128xf32>
    %40 = math.exp %39 : vector<1x128xf32>
    %cst_10 = arith.constant 1.000000e+00 : f32
    %41 = vector.broadcast %cst_10 : f32 to vector<1x128xf32>
    %42 = arith.addf %41, %40 : vector<1x128xf32>
    %cst_11 = arith.constant 1.000000e+00 : f32
    %43 = vector.broadcast %cst_11 : f32 to vector<1x128xf32>
    %44 = arith.divf %43, %42 : vector<1x128xf32>
    %cst_12 = arith.constant 1.000000e+00 : f32
    %45 = vector.broadcast %cst_12 : f32 to vector<1x128xf32>
    %46 = arith.subf %45, %44 : vector<1x128xf32>
    %47 = tpu.concatenate %46, %44 in 0 : vector<1x128xf32>, vector<1x128xf32> -> vector<2x128xf32>
    %c0_13 = arith.constant 0 : index
    %c0_14 = arith.constant 0 : index
    %48 = vector.load %arg6[%c0_13, %c0_14] : memref<2x128xf32, #tpu.memory_space<vmem>>, vector<2x128xf32>
    tpu.vector_store %arg6[%c0_13, %c0_14], %47 {strides = array<i32>} : memref<2x128xf32, #tpu.memory_space<vmem>>, vector<2x128xf32>,
    return
  }
  func.func @transform_0(%arg0: i32) -> (i32, i32) {
    %c0_i32 = arith.constant 0 : i32
    %c0_i32_0 = arith.constant 0 : i32
    return %c0_i32, %arg0 : i32, i32
  }
  func.func @transform_1(%arg0: i32) -> (i32, i32) {
    %c0_i32 = arith.constant 0 : i32
    %c0_i32_0 = arith.constant 0 : i32
    %c0_i32_1 = arith.constant 0 : i32
    return %c0_i32, %c0_i32_0 : i32, i32
  }
  func.func @transform_2(%arg0: i32) -> (i32, i32) {
    %c0_i32 = arith.constant 0 : i32
    %c0_i32_0 = arith.constant 0 : i32
    %c0_i32_1 = arith.constant 0 : i32
    return %c0_i32, %c0_i32_0 : i32, i32
  }
  func.func @transform_3(%arg0: i32) -> (i32, i32) {
    %c0_i32 = arith.constant 0 : i32
    %c0_i32_0 = arith.constant 0 : i32
    %c0_i32_1 = arith.constant 0 : i32
    return %c0_i32, %c0_i32_0 : i32, i32
  }
  func.func @transform_4(%arg0: i32) -> i32 {
    %c0_i32 = arith.constant 0 : i32
    %c0_i32_0 = arith.constant 0 : i32
    return %c0_i32 : i32
  }
  func.func @transform_5(%arg0: i32) -> (i32, i32) {
    %c0_i32 = arith.constant 0 : i32
    %c0_i32_0 = arith.constant 0 : i32
    return %c0_i32, %arg0 : i32, i32
  }
}

</mosaic_0001>

<llo_original>
// kernel: tpu_custom_call.1
$region0: #{tpu_custom_call.1}
  #allocation0 [shape = 'u32[]', space=smem, size = 0x4, offset = 0x4, fixed_abs, tag = 'smem constant byte address 0x4 - core index']
  #allocation1 [shape = 'u32[144,128]{1,0:T(1,128)}', space=vmem, size = 0x12000, scoped, tag = 'internal scratch']
  #allocation2 [shape = 'f32[1]{0:T(128)S(6)}', space=smem, size = 0x200, scoped, tag = 'scoped memory for tpu_custom_call.1']
  %s0 = inlined_call_operand.vmem [shape: f32[4,256], index: 0, kind: input, shape index: {}]
  %s1 = inlined_call_operand.vmem [shape: f32[128,4], index: 1, kind: input, shape index: {}]
  %s2 = inlined_call_operand.vmem [shape: f32[128,1], index: 2, kind: input, shape index: {}]
  %s3 = inlined_call_operand.vmem [shape: f32[128,1], index: 3, kind: input, shape index: {}]
  %s4 = inlined_call_operand.<no memory space> [shape: f32[1], index: 4, kind: input, shape index: {}]
  %s5 = inlined_call_operand.hbm [shape: f32[2,256], index: 5, kind: output, shape index: {}]
  %s6 = sld [smem:[#allocation0]]
  $region53: #{tpu_custom_call.1} parent=0
    _
  %s8 = ssub.s32 1, %s6
  %s9 = scalar_select 0, %s8, %s6
  %10 = sst [smem:[#allocation2]] %s4
  $region1: #{tpu_custom_call.1} parent=0
    #allocation3 [shape = 'u8[2048]{0}', space=vmem, size = 0x800, scoped, tag = 'output window, operand 0']
    #allocation4 [shape = 's32[2]{0}', space=sflag, size = 0x8, scoped, tag = 'scoped memory for tpu_custom_call.1']
    %11 = vsyncpa [#allocation4], 0
    %s12 = scalar_lea.sflag [#allocation4], 1
    %13 = vsyncpa %s12, 0
    loop: start=0, step=1, limit=4
    $region2: #{tpu_custom_call.1} parent=1 // loop_pre_header
      _
    $region3: #{tpu_custom_call.1} parent=1 // loop_header
      %s15 = sphi 0, %s19
      %p16 = scmp.ge.s32.totalorder %s15, 4
      %s25 = sphi 0, %s27
      %s28 = sphi 0, %s25
      %s29 = sphi 0, %s28
      %s45 = sphi 0, %s29
      %s49 = sphi 0, %s49
      %s51 = sphi 0, %s49
      %s52 = sphi 0, %s51
      %s66 = sphi 0, %s52
      %s70 = sphi 0, %s70
      %s72 = sphi 0, %s70
      %s73 = sphi 0, %s72
      %s87 = sphi 0, %s73
      %s91 = sphi 0, %s91
      %s93 = sphi 0, %s91
      %s94 = sphi 0, %s93
      %s108 = sphi 0, %s94
      %s112 = sphi 0, %s112
      %s114 = sphi 0, %s112
      %s115 = sphi 0, %s114
      %s129 = sphi 0, %s115
      %s135 = sphi 0, %s137
      %s138 = sphi 0, %s135
      %s139 = sphi 0, %s138
      %s155 = sphi 0, %s139
    $region4: #{tpu_custom_call.1} parent=1 // loop_header_branch
      %18 = sbr.rel (%p16) target = $region8
    $region5: #{tpu_custom_call.1} parent=1 // loop_body
      %s20 = ssub.s32 %s15, 1
      %s21 = ssub.s32 %s15, 2
      %s22 = sadd.s32 %s15, 1
      %s23 = ssub.s32 %s15, %s22
      %p24 = scmp.eq.s32.totalorder %s23, 0
      %s26 = sadd.s32 %s25, 1
      %s27 = scalar_select %p24, %s25, %s26
      %p30 = pneg %p24
      %p31 = scmp.eq.s32.totalorder %s15, 1
      %p32 = por %p30, %p31
      %p33 = scmp.ne.s32.totalorder %s25, %s28
      %p34 = scmp.eq.s32.totalorder %s15, 0
      %p35 = por %p33, %p34
      %p36 = scmp.ne.s32.totalorder %s25, %s28
      %p37 = scmp.eq.s32.totalorder %s20, 1
      %p38 = por %p36, %p37
      %p39 = scmp.ne.s32.totalorder %s28, %s29
      %p40 = scmp.eq.s32.totalorder %s20, 0
      %p41 = por %p39, %p40
      %p42 = scmp.ne.s32.totalorder %s28, %s29
      %p43 = scmp.eq.s32.totalorder %s21, 1
      %p44 = por %p42, %p43
      %p46 = scmp.ne.s32.totalorder %s29, %s45
      %p47 = scmp.eq.s32.totalorder %s21, 0
      %p48 = por %p46, %p47
      %s50 = sadd.s32 %s49, 1
      %p53 = scmp.eq.s32.totalorder %s15, 1
      %p54 = scmp.ne.s32.totalorder %s49, %s51
      %p55 = scmp.eq.s32.totalorder %s15, 0
      %p56 = por %p54, %p55
      %p57 = scmp.ne.s32.totalorder %s49, %s51
      %p58 = scmp.eq.s32.totalorder %s20, 1
      %p59 = por %p57, %p58
      %p60 = scmp.ne.s32.totalorder %s51, %s52
      %p61 = scmp.eq.s32.totalorder %s20, 0
      %p62 = por %p60, %p61
      %p63 = scmp.ne.s32.totalorder %s51, %s52
      %p64 = scmp.eq.s32.totalorder %s21, 1
      %p65 = por %p63, %p64
      %p67 = scmp.ne.s32.totalorder %s52, %s66
      %p68 = scmp.eq.s32.totalorder %s21, 0
      %p69 = por %p67, %p68
      %s71 = sadd.s32 %s70, 1
      %p74 = scmp.eq.s32.totalorder %s15, 1
      %p75 = scmp.ne.s32.totalorder %s70, %s72
      %p76 = scmp.eq.s32.totalorder %s15, 0
      %p77 = por %p75, %p76
      %p78 = scmp.ne.s32.totalorder %s70, %s72
      %p79 = scmp.eq.s32.totalorder %s20, 1
      %p80 = por %p78, %p79
      %p81 = scmp.ne.s32.totalorder %s72, %s73
      %p82 = scmp.eq.s32.totalorder %s20, 0
      %p83 = por %p81, %p82
      %p84 = scmp.ne.s32.totalorder %s72, %s73
      %p85 = scmp.eq.s32.totalorder %s21, 1
      %p86 = por %p84, %p85
      %p88 = scmp.ne.s32.totalorder %s73, %s87
      %p89 = scmp.eq.s32.totalorder %s21, 0
      %p90 = por %p88, %p89
      %s92 = sadd.s32 %s91, 1
      %p95 = scmp.eq.s32.totalorder %s15, 1
      %p96 = scmp.ne.s32.totalorder %s91, %s93
      %p97 = scmp.eq.s32.totalorder %s15, 0
      %p98 = por %p96, %p97
      %p99 = scmp.ne.s32.totalorder %s91, %s93
      %p100 = scmp.eq.s32.totalorder %s20, 1
      %p101 = por %p99, %p100
      %p102 = scmp.ne.s32.totalorder %s93, %s94
      %p103 = scmp.eq.s32.totalorder %s20, 0
      %p104 = por %p102, %p103
      %p105 = scmp.ne.s32.totalorder %s93, %s94
      %p106 = scmp.eq.s32.totalorder %s21, 1
      %p107 = por %p105, %p106
      %p109 = scmp.ne.s32.totalorder %s94, %s108
      %p110 = scmp.eq.s32.totalorder %s21, 0
      %p111 = por %p109, %p110
      %s113 = sadd.s32 %s112, 1
      %p116 = scmp.eq.s32.totalorder %s15, 1
      %p117 = scmp.ne.s32.totalorder %s112, %s114
      %p118 = scmp.eq.s32.totalorder %s15, 0
      %p119 = por %p117, %p118
      %p120 = scmp.ne.s32.totalorder %s112, %s114
      %p121 = scmp.eq.s32.totalorder %s20, 1
      %p122 = por %p120, %p121
      %p123 = scmp.ne.s32.totalorder %s114, %s115
      %p124 = scmp.eq.s32.totalorder %s20, 0
      %p125 = por %p123, %p124
      %p126 = scmp.ne.s32.totalorder %s114, %s115
      %p127 = scmp.eq.s32.totalorder %s21, 1
      %p128 = por %p126, %p127
      %p130 = scmp.ne.s32.totalorder %s115, %s129
      %p131 = scmp.eq.s32.totalorder %s21, 0
      %p132 = por %p130, %p131
      %s133 = ssub.s32 %s15, %s22
      %p134 = scmp.eq.s32.totalorder %s133, 0
      %s136 = sadd.s32 %s135, 1
      %s137 = scalar_select %p134, %s135, %s136
      %p140 = pneg %p134
      %p141 = scmp.eq.s32.totalorder %s15, 1
      %p142 = por %p140, %p141
      %p143 = scmp.ne.s32.totalorder %s135, %s138
      %p144 = scmp.eq.s32.totalorder %s15, 0
      %p145 = por %p143, %p144
      %p146 = scmp.ne.s32.totalorder %s135, %s138
      %p147 = scmp.eq.s32.totalorder %s20, 1
      %p148 = por %p146, %p147
      %p149 = scmp.ne.s32.totalorder %s138, %s139
      %p150 = scmp.eq.s32.totalorder %s20, 0
      %p151 = por %p149, %p150
      %p152 = scmp.ne.s32.totalorder %s138, %s139
      %p153 = scmp.eq.s32.totalorder %s21, 1
      %p154 = por %p152, %p153
      %p156 = scmp.ne.s32.totalorder %s139, %s155
      %p157 = scmp.eq.s32.totalorder %s21, 0
      %p158 = por %p156, %p157
      %p159 = scmp.le.s32.totalorder 1, %s15
      %p160 = scmp.lt.s32.totalorder %s15, 3
      %p161 = pnand %p159, %p160
      %p162 = pneg %p161
      // Predicated region
      $region9: #{tpu_custom_call.1} parent=5 // pred_check
        _
      $region10: #{tpu_custom_call.1} parent=5 // pred_check_branch
        %164 = sbr.rel (%p161) target = $region12
      $region11: #{tpu_custom_call.1} parent=5 // pred_region
        %s165 = ssub.s32 %s15, 1
        // Predicated region
        $region13: #{tpu_custom_call.1} parent=11 // pred_check
          %p166 = pneg %p62
        $region14: #{tpu_custom_call.1} parent=11 // pred_check_branch
          %168 = sbr.rel (%p166) target = $region16
        $region15: #{tpu_custom_call.1} parent=11 // pred_region
          _
        $region16: #{tpu_custom_call.1} parent=11 // pred_fallthru
          _
        // Predicated region
        $region17: #{tpu_custom_call.1} parent=11 // pred_check
          %p169 = pneg %p83
        $region18: #{tpu_custom_call.1} parent=11 // pred_check_branch
          %171 = sbr.rel (%p169) target = $region20
        $region19: #{tpu_custom_call.1} parent=11 // pred_region
          _
        $region20: #{tpu_custom_call.1} parent=11 // pred_fallthru
          _
        // Predicated region
        $region21: #{tpu_custom_call.1} parent=11 // pred_check
          %p172 = pneg %p104
        $region22: #{tpu_custom_call.1} parent=11 // pred_check_branch
          %174 = sbr.rel (%p172) target = $region24
        $region23: #{tpu_custom_call.1} parent=11 // pred_region
          _
        $region24: #{tpu_custom_call.1} parent=11 // pred_fallthru
          _
        // Predicated region
        $region25: #{tpu_custom_call.1} parent=11 // pred_check
          %p175 = pneg %p125
        $region26: #{tpu_custom_call.1} parent=11 // pred_check_branch
          %177 = sbr.rel (%p175) target = $region28
        $region27: #{tpu_custom_call.1} parent=11 // pred_region
          _
        $region28: #{tpu_custom_call.1} parent=11 // pred_fallthru
          _
      $region12: #{tpu_custom_call.1} parent=5 // pred_fallthru
        _
      %p178 = scmp.lt.s32.totalorder %s15, 2
      // Predicated region
      $region29: #{tpu_custom_call.1} parent=5 // pred_check
        %p179 = pneg %p178
      $region30: #{tpu_custom_call.1} parent=5 // pred_check_branch
        %181 = sbr.rel (%p179) target = $region32
      $region31: #{tpu_custom_call.1} parent=5 // pred_region
        // Predicated region
        $region33: #{tpu_custom_call.1} parent=31 // pred_check
          %p182 = pneg %p35
        $region34: #{tpu_custom_call.1} parent=31 // pred_check_branch
          %184 = sbr.rel (%p182) target = $region36
        $region35: #{tpu_custom_call.1} parent=31 // pred_region
          %p185 = scmp.lt.s32.totalorder %s15, 1
          %s186 = scalar_select %p185, %s15, 1
          %s187 = smul.addr %s186, 4
          %s188 = scalar_lea.vmem %s0, %s187
        $region36: #{tpu_custom_call.1} parent=31 // pred_fallthru
          _
      $region32: #{tpu_custom_call.1} parent=5 // pred_fallthru
        _
      %p189 = scmp.le.s32.totalorder 1, %s15
      %p190 = scmp.lt.s32.totalorder %s15, 3
      %p191 = pnand %p189, %p190
      %p192 = pneg %p191
      // Predicated region
      $region37: #{tpu_custom_call.1} parent=5 // pred_check
        _
      $region38: #{tpu_custom_call.1} parent=5 // pred_check_branch
        %194 = sbr.rel (%p191) target = $region40
      $region39: #{tpu_custom_call.1} parent=5 // pred_region
        %s195 = ssub.s32 %s15, 1
        %p196 = scmp.lt.s32.totalorder %s20, 1
        %s197 = scalar_select %p196, %s20, 1
        %s198 = smul.addr %s197, 4
        %s199 = scalar_lea.vmem %s0, %s198
        %p200 = pneg %p41
        %p201 = pneg %p38
        %p202 = pneg %p62
        %p203 = pneg %p59
        %p204 = pneg %p83
        %p205 = pneg %p80
        %p206 = pneg %p104
        %p207 = pneg %p101
        %p208 = pneg %p125
        %p209 = pneg %p122
        %p210 = pneg %p151
        %p211 = pneg %p148
        %s212 = sand.u32 %s138, 1
        %s213 = scalar_lea.sflag [#allocation4], %s212
        %s214 = sand.u32 %s138, 1
        %s215 = smul.addr %s214, 2
        %s216 = scalar_lea.vmem [#allocation3], %s215
        %p217 = scmp.lt.s32.totalorder %s20, 1
        %s218 = scalar_select %p217, %s20, 1
        %s219 = smul.addr %s218, 4
        %s220 = scalar_lea.vmem %s0, %s219
        %v221 = vld [vmem:[%s220] sm:$0xf]
        %v222 = vld [vmem:[%s1] sm:$0xff]
        %v223 = vld [vmem:[%s1 + $0x8] sm:$0xff]
        %v224 = vld [vmem:[%s1 + $0x10] sm:$0xff]
        %v225 = vld [vmem:[%s1 + $0x18] sm:$0xff]
        %v226 = vld [vmem:[%s1 + $0x20] sm:$0xff]
        %v227 = vld [vmem:[%s1 + $0x28] sm:$0xff]
        %v228 = vld [vmem:[%s1 + $0x30] sm:$0xff]
        %v229 = vld [vmem:[%s1 + $0x38] sm:$0xff]
        %v230 = vld [vmem:[%s1 + $0x40] sm:$0xff]
        %v231 = vld [vmem:[%s1 + $0x48] sm:$0xff]
        %v232 = vld [vmem:[%s1 + $0x50] sm:$0xff]
        %v233 = vld [vmem:[%s1 + $0x58] sm:$0xff]
        %v234 = vld [vmem:[%s1 + $0x60] sm:$0xff]
        %v235 = vld [vmem:[%s1 + $0x68] sm:$0xff]
        %v236 = vld [vmem:[%s1 + $0x70] sm:$0xff]
        %v237 = vld [vmem:[%s1 + $0x78] sm:$0xff]
        %v238 = vld [vmem:[%s2] sm:$0xff]
        %v239 = vld [vmem:[%s2 + $0x8] sm:$0xff]
        %v240 = vld [vmem:[%s2 + $0x10] sm:$0xff]
        %v241 = vld [vmem:[%s2 + $0x18] sm:$0xff]
        %v242 = vld [vmem:[%s2 + $0x20] sm:$0xff]
        %v243 = vld [vmem:[%s2 + $0x28] sm:$0xff]
        %v244 = vld [vmem:[%s2 + $0x30] sm:$0xff]
        %v245 = vld [vmem:[%s2 + $0x38] sm:$0xff]
        %v246 = vld [vmem:[%s2 + $0x40] sm:$0xff]
        %v247 = vld [vmem:[%s2 + $0x48] sm:$0xff]
        %v248 = vld [vmem:[%s2 + $0x50] sm:$0xff]
        %v249 = vld [vmem:[%s2 + $0x58] sm:$0xff]
        %v250 = vld [vmem:[%s2 + $0x60] sm:$0xff]
        %v251 = vld [vmem:[%s2 + $0x68] sm:$0xff]
        %v252 = vld [vmem:[%s2 + $0x70] sm:$0xff]
        %v253 = vld [vmem:[%s2 + $0x78] sm:$0xff]
        %255 = vset.pattern.permute.xlu0 0
        %256 = vperm.xlu0 %255, %v222
        %v257 = vpop.permute.xlu0 %256
        %260 = vset.pattern.permute.xlu0 0
        %261 = vperm.xlu0 %260, %v223
        %v262 = vpop.permute.xlu0 %261
        %265 = vset.pattern.permute.xlu0 0
        %266 = vperm.xlu0 %265, %v224
        %v267 = vpop.permute.xlu0 %266
        %270 = vset.pattern.permute.xlu0 0
        %271 = vperm.xlu0 %270, %v225
        %v272 = vpop.permute.xlu0 %271
        %275 = vset.pattern.permute.xlu0 0
        %276 = vperm.xlu0 %275, %v226
        %v277 = vpop.permute.xlu0 %276
        %280 = vset.pattern.permute.xlu0 0
        %281 = vperm.xlu0 %280, %v227
        %v282 = vpop.permute.xlu0 %281
        %285 = vset.pattern.permute.xlu0 0
        %286 = vperm.xlu0 %285, %v228
        %v287 = vpop.permute.xlu0 %286
        %290 = vset.pattern.permute.xlu0 0
        %291 = vperm.xlu0 %290, %v229
        %v292 = vpop.permute.xlu0 %291
        %295 = vset.pattern.permute.xlu0 0
        %296 = vperm.xlu0 %295, %v230
        %v297 = vpop.permute.xlu0 %296
        %300 = vset.pattern.permute.xlu0 0
        %301 = vperm.xlu0 %300, %v231
        %v302 = vpop.permute.xlu0 %301
        %305 = vset.pattern.permute.xlu0 0
        %306 = vperm.xlu0 %305, %v232
        %v307 = vpop.permute.xlu0 %306
        %310 = vset.pattern.permute.xlu0 0
        %311 = vperm.xlu0 %310, %v233
        %v312 = vpop.permute.xlu0 %311
        %315 = vset.pattern.permute.xlu0 0
        %316 = vperm.xlu0 %315, %v234
        %v317 = vpop.permute.xlu0 %316
        %320 = vset.pattern.permute.xlu0 0
        %321 = vperm.xlu0 %320, %v235
        %v322 = vpop.permute.xlu0 %321
        %325 = vset.pattern.permute.xlu0 0
        %326 = vperm.xlu0 %325, %v236
        %v327 = vpop.permute.xlu0 %326
        %330 = vset.pattern.permute.xlu0 0
        %331 = vperm.xlu0 %330, %v237
        %v332 = vpop.permute.xlu0 %331
        %v334 = vlaneseq
        %v335 = vshrl.u32 %v334, 7
        %v336 = vsub.s32 0, %v335
        %v337 = vrot.slane %v221, %v336
        %v338 = vmul.f32 %v257, %v337
        %v339 = vmul.f32 %v262, %v337
        %v340 = vmul.f32 %v267, %v337
        %v341 = vmul.f32 %v272, %v337
        %v342 = vmul.f32 %v277, %v337
        %v343 = vmul.f32 %v282, %v337
        %v344 = vmul.f32 %v287, %v337
        %v345 = vmul.f32 %v292, %v337
        %v346 = vmul.f32 %v297, %v337
        %v347 = vmul.f32 %v302, %v337
        %v348 = vmul.f32 %v307, %v337
        %v349 = vmul.f32 %v312, %v337
        %v350 = vmul.f32 %v317, %v337
        %v351 = vmul.f32 %v322, %v337
        %v352 = vmul.f32 %v327, %v337
        %v353 = vmul.f32 %v332, %v337
        %355 = vset.pattern.permute.xlu0 0
        %356 = vperm.xlu0 %355, %v238
        %v357 = vpop.permute.xlu0 %356
        %360 = vset.pattern.permute.xlu0 0
        %361 = vperm.xlu0 %360, %v239
        %v362 = vpop.permute.xlu0 %361
        %365 = vset.pattern.permute.xlu0 0
        %366 = vperm.xlu0 %365, %v240
        %v367 = vpop.permute.xlu0 %366
        %370 = vset.pattern.permute.xlu0 0
        %371 = vperm.xlu0 %370, %v241
        %v372 = vpop.permute.xlu0 %371
        %375 = vset.pattern.permute.xlu0 0
        %376 = vperm.xlu0 %375, %v242
        %v377 = vpop.permute.xlu0 %376
        %380 = vset.pattern.permute.xlu0 0
        %381 = vperm.xlu0 %380, %v243
        %v382 = vpop.permute.xlu0 %381
        %385 = vset.pattern.permute.xlu0 0
        %386 = vperm.xlu0 %385, %v244
        %v387 = vpop.permute.xlu0 %386
        %390 = vset.pattern.permute.xlu0 0
        %391 = vperm.xlu0 %390, %v245
        %v392 = vpop.permute.xlu0 %391
        %395 = vset.pattern.permute.xlu0 0
        %396 = vperm.xlu0 %395, %v246
        %v397 = vpop.permute.xlu0 %396
        %400 = vset.pattern.permute.xlu0 0
        %401 = vperm.xlu0 %400, %v247
        %v402 = vpop.permute.xlu0 %401
        %405 = vset.pattern.permute.xlu0 0
        %406 = vperm.xlu0 %405, %v248
        %v407 = vpop.permute.xlu0 %406
        %410 = vset.pattern.permute.xlu0 0
        %411 = vperm.xlu0 %410, %v249
        %v412 = vpop.permute.xlu0 %411
        %415 = vset.pattern.permute.xlu0 0
        %416 = vperm.xlu0 %415, %v250
        %v417 = vpop.permute.xlu0 %416
        %420 = vset.pattern.permute.xlu0 0
        %421 = vperm.xlu0 %420, %v251
        %v422 = vpop.permute.xlu0 %421
        %425 = vset.pattern.permute.xlu0 0
        %426 = vperm.xlu0 %425, %v252
        %v427 = vpop.permute.xlu0 %426
        %430 = vset.pattern.permute.xlu0 0
        %431 = vperm.xlu0 %430, %v253
        %v432 = vpop.permute.xlu0 %431
        %v434 = vadd.f32 %v357, %v338
        %v435 = vadd.f32 %v362, %v339
        %v436 = vadd.f32 %v367, %v340
        %v437 = vadd.f32 %v372, %v341
        %v438 = vadd.f32 %v377, %v342
        %v439 = vadd.f32 %v382, %v343
        %v440 = vadd.f32 %v387, %v344
        %v441 = vadd.f32 %v392, %v345
        %v442 = vadd.f32 %v397, %v346
        %v443 = vadd.f32 %v402, %v347
        %v444 = vadd.f32 %v407, %v348
        %v445 = vadd.f32 %v412, %v349
        %v446 = vadd.f32 %v417, %v350
        %v447 = vadd.f32 %v422, %v351
        %v448 = vadd.f32 %v427, %v352
        %v449 = vadd.f32 %v432, %v353
        %450 = vset.pattern.permute.xlu0 1
        %451 = vperm.xlu0 %450, %v222
        %v452 = vpop.permute.xlu0 %451
        %454 = vset.pattern.permute.xlu0 1
        %455 = vperm.xlu0 %454, %v223
        %v456 = vpop.permute.xlu0 %455
        %458 = vset.pattern.permute.xlu0 1
        %459 = vperm.xlu0 %458, %v224
        %v460 = vpop.permute.xlu0 %459
        %462 = vset.pattern.permute.xlu0 1
        %463 = vperm.xlu0 %462, %v225
        %v464 = vpop.permute.xlu0 %463
        %466 = vset.pattern.permute.xlu0 1
        %467 = vperm.xlu0 %466, %v226
        %v468 = vpop.permute.xlu0 %467
        %470 = vset.pattern.permute.xlu0 1
        %471 = vperm.xlu0 %470, %v227
        %v472 = vpop.permute.xlu0 %471
        %474 = vset.pattern.permute.xlu0 1
        %475 = vperm.xlu0 %474, %v228
        %v476 = vpop.permute.xlu0 %475
        %478 = vset.pattern.permute.xlu0 1
        %479 = vperm.xlu0 %478, %v229
        %v480 = vpop.permute.xlu0 %479
        %482 = vset.pattern.permute.xlu0 1
        %483 = vperm.xlu0 %482, %v230
        %v484 = vpop.permute.xlu0 %483
        %486 = vset.pattern.permute.xlu0 1
        %487 = vperm.xlu0 %486, %v231
        %v488 = vpop.permute.xlu0 %487
        %490 = vset.pattern.permute.xlu0 1
        %491 = vperm.xlu0 %490, %v232
        %v492 = vpop.permute.xlu0 %491
        %494 = vset.pattern.permute.xlu0 1
        %495 = vperm.xlu0 %494, %v233
        %v496 = vpop.permute.xlu0 %495
        %498 = vset.pattern.permute.xlu0 1
        %499 = vperm.xlu0 %498, %v234
        %v500 = vpop.permute.xlu0 %499
        %502 = vset.pattern.permute.xlu0 1
        %503 = vperm.xlu0 %502, %v235
        %v504 = vpop.permute.xlu0 %503
        %506 = vset.pattern.permute.xlu0 1
        %507 = vperm.xlu0 %506, %v236
        %v508 = vpop.permute.xlu0 %507
        %510 = vset.pattern.permute.xlu0 1
        %511 = vperm.xlu0 %510, %v237
        %v512 = vpop.permute.xlu0 %511
        %v514 = vlaneseq
        %v515 = vshrl.u32 %v514, 7
        %v516 = vsub.s32 1, %v515
        %v517 = vrot.slane %v221, %v516
        %v518 = vmul.f32 %v452, %v517
        %v519 = vmul.f32 %v456, %v517
        %v520 = vmul.f32 %v460, %v517
        %v521 = vmul.f32 %v464, %v517
        %v522 = vmul.f32 %v468, %v517
        %v523 = vmul.f32 %v472, %v517
        %v524 = vmul.f32 %v476, %v517
        %v525 = vmul.f32 %v480, %v517
        %v526 = vmul.f32 %v484, %v517
        %v527 = vmul.f32 %v488, %v517
        %v528 = vmul.f32 %v492, %v517
        %v529 = vmul.f32 %v496, %v517
        %v530 = vmul.f32 %v500, %v517
        %v531 = vmul.f32 %v504, %v517
        %v532 = vmul.f32 %v508, %v517
        %v533 = vmul.f32 %v512, %v517
        %v534 = vadd.f32 %v434, %v518
        %v535 = vadd.f32 %v435, %v519
        %v536 = vadd.f32 %v436, %v520
        %v537 = vadd.f32 %v437, %v521
        %v538 = vadd.f32 %v438, %v522
        %v539 = vadd.f32 %v439, %v523
        %v540 = vadd.f32 %v440, %v524
        %v541 = vadd.f32 %v441, %v525
        %v542 = vadd.f32 %v442, %v526
        %v543 = vadd.f32 %v443, %v527
        %v544 = vadd.f32 %v444, %v528
        %v545 = vadd.f32 %v445, %v529
        %v546 = vadd.f32 %v446, %v530
        %v547 = vadd.f32 %v447, %v531
        %v548 = vadd.f32 %v448, %v532
        %v549 = vadd.f32 %v449, %v533
        %550 = vset.pattern.permute.xlu0 2
        %551 = vperm.xlu0 %550, %v222
        %v552 = vpop.permute.xlu0 %551
        %554 = vset.pattern.permute.xlu0 2
        %555 = vperm.xlu0 %554, %v223
        %v556 = vpop.permute.xlu0 %555
        %558 = vset.pattern.permute.xlu0 2
        %559 = vperm.xlu0 %558, %v224
        %v560 = vpop.permute.xlu0 %559
        %562 = vset.pattern.permute.xlu0 2
        %563 = vperm.xlu0 %562, %v225
        %v564 = vpop.permute.xlu0 %563
        %566 = vset.pattern.permute.xlu0 2
        %567 = vperm.xlu0 %566, %v226
        %v568 = vpop.permute.xlu0 %567
        %570 = vset.pattern.permute.xlu0 2
        %571 = vperm.xlu0 %570, %v227
        %v572 = vpop.permute.xlu0 %571
        %574 = vset.pattern.permute.xlu0 2
        %575 = vperm.xlu0 %574, %v228
        %v576 = vpop.permute.xlu0 %575
        %578 = vset.pattern.permute.xlu0 2
        %579 = vperm.xlu0 %578, %v229
        %v580 = vpop.permute.xlu0 %579
        %582 = vset.pattern.permute.xlu0 2
        %583 = vperm.xlu0 %582, %v230
        %v584 = vpop.permute.xlu0 %583
        %586 = vset.pattern.permute.xlu0 2
        %587 = vperm.xlu0 %586, %v231
        %v588 = vpop.permute.xlu0 %587
        %590 = vset.pattern.permute.xlu0 2
        %591 = vperm.xlu0 %590, %v232
        %v592 = vpop.permute.xlu0 %591
        %594 = vset.pattern.permute.xlu0 2
        %595 = vperm.xlu0 %594, %v233
        %v596 = vpop.permute.xlu0 %595
        %598 = vset.pattern.permute.xlu0 2
        %599 = vperm.xlu0 %598, %v234
        %v600 = vpop.permute.xlu0 %599
        %602 = vset.pattern.permute.xlu0 2
        %603 = vperm.xlu0 %602, %v235
        %v604 = vpop.permute.xlu0 %603
        %606 = vset.pattern.permute.xlu0 2
        %607 = vperm.xlu0 %606, %v236
        %v608 = vpop.permute.xlu0 %607
        %610 = vset.pattern.permute.xlu0 2
        %611 = vperm.xlu0 %610, %v237
        %v612 = vpop.permute.xlu0 %611
        %v614 = vlaneseq
        %v615 = vshrl.u32 %v614, 7
        %v616 = vsub.s32 2, %v615
        %v617 = vrot.slane %v221, %v616
        %v618 = vmul.f32 %v552, %v617
        %v619 = vmul.f32 %v556, %v617
        %v620 = vmul.f32 %v560, %v617
        %v621 = vmul.f32 %v564, %v617
        %v622 = vmul.f32 %v568, %v617
        %v623 = vmul.f32 %v572, %v617
        %v624 = vmul.f32 %v576, %v617
        %v625 = vmul.f32 %v580, %v617
        %v626 = vmul.f32 %v584, %v617
        %v627 = vmul.f32 %v588, %v617
        %v628 = vmul.f32 %v592, %v617
        %v629 = vmul.f32 %v596, %v617
        %v630 = vmul.f32 %v600, %v617
        %v631 = vmul.f32 %v604, %v617
        %v632 = vmul.f32 %v608, %v617
        %v633 = vmul.f32 %v612, %v617
        %v634 = vadd.f32 %v534, %v618
        %v635 = vadd.f32 %v535, %v619
        %v636 = vadd.f32 %v536, %v620
        %v637 = vadd.f32 %v537, %v621
        %v638 = vadd.f32 %v538, %v622
        %v639 = vadd.f32 %v539, %v623
        %v640 = vadd.f32 %v540, %v624
        %v641 = vadd.f32 %v541, %v625
        %v642 = vadd.f32 %v542, %v626
        %v643 = vadd.f32 %v543, %v627
        %v644 = vadd.f32 %v544, %v628
        %v645 = vadd.f32 %v545, %v629
        %v646 = vadd.f32 %v546, %v630
        %v647 = vadd.f32 %v547, %v631
        %v648 = vadd.f32 %v548, %v632
        %v649 = vadd.f32 %v549, %v633
        %650 = vset.pattern.permute.xlu0 3
        %651 = vperm.xlu0 %650, %v222
        %v652 = vpop.permute.xlu0 %651
        %654 = vset.pattern.permute.xlu0 3
        %655 = vperm.xlu0 %654, %v223
        %v656 = vpop.permute.xlu0 %655
        %658 = vset.pattern.permute.xlu0 3
        %659 = vperm.xlu0 %658, %v224
        %v660 = vpop.permute.xlu0 %659
        %662 = vset.pattern.permute.xlu0 3
        %663 = vperm.xlu0 %662, %v225
        %v664 = vpop.permute.xlu0 %663
        %666 = vset.pattern.permute.xlu0 3
        %667 = vperm.xlu0 %666, %v226
        %v668 = vpop.permute.xlu0 %667
        %670 = vset.pattern.permute.xlu0 3
        %671 = vperm.xlu0 %670, %v227
        %v672 = vpop.permute.xlu0 %671
        %674 = vset.pattern.permute.xlu0 3
        %675 = vperm.xlu0 %674, %v228
        %v676 = vpop.permute.xlu0 %675
        %678 = vset.pattern.permute.xlu0 3
        %679 = vperm.xlu0 %678, %v229
        %v680 = vpop.permute.xlu0 %679
        %682 = vset.pattern.permute.xlu0 3
        %683 = vperm.xlu0 %682, %v230
        %v684 = vpop.permute.xlu0 %683
        %686 = vset.pattern.permute.xlu0 3
        %687 = vperm.xlu0 %686, %v231
        %v688 = vpop.permute.xlu0 %687
        %690 = vset.pattern.permute.xlu0 3
        %691 = vperm.xlu0 %690, %v232
        %v692 = vpop.permute.xlu0 %691
        %694 = vset.pattern.permute.xlu0 3
        %695 = vperm.xlu0 %694, %v233
        %v696 = vpop.permute.xlu0 %695
        %698 = vset.pattern.permute.xlu0 3
        %699 = vperm.xlu0 %698, %v234
        %v700 = vpop.permute.xlu0 %699
        %702 = vset.pattern.permute.xlu0 3
        %703 = vperm.xlu0 %702, %v235
        %v704 = vpop.permute.xlu0 %703
        %706 = vset.pattern.permute.xlu0 3
        %707 = vperm.xlu0 %706, %v236
        %v708 = vpop.permute.xlu0 %707
        %710 = vset.pattern.permute.xlu0 3
        %711 = vperm.xlu0 %710, %v237
        %v712 = vpop.permute.xlu0 %711
        %v714 = vlaneseq
        %v715 = vshrl.u32 %v714, 7
        %v716 = vsub.s32 3, %v715
        %v717 = vrot.slane %v221, %v716
        %v718 = vmul.f32 %v652, %v717
        %v719 = vmul.f32 %v656, %v717
        %v720 = vmul.f32 %v660, %v717
        %v721 = vmul.f32 %v664, %v717
        %v722 = vmul.f32 %v668, %v717
        %v723 = vmul.f32 %v672, %v717
        %v724 = vmul.f32 %v676, %v717
        %v725 = vmul.f32 %v680, %v717
        %v726 = vmul.f32 %v684, %v717
        %v727 = vmul.f32 %v688, %v717
        %v728 = vmul.f32 %v692, %v717
        %v729 = vmul.f32 %v696, %v717
        %v730 = vmul.f32 %v700, %v717
        %v731 = vmul.f32 %v704, %v717
        %v732 = vmul.f32 %v708, %v717
        %v733 = vmul.f32 %v712, %v717
        %v734 = vadd.f32 %v634, %v718
        %v735 = vadd.f32 %v635, %v719
        %v736 = vadd.f32 %v636, %v720
        %v737 = vadd.f32 %v637, %v721
        %v738 = vadd.f32 %v638, %v722
        %v739 = vadd.f32 %v639, %v723
        %v740 = vadd.f32 %v640, %v724
        %v741 = vadd.f32 %v641, %v725
        %v742 = vadd.f32 %v642, %v726
        %v743 = vadd.f32 %v643, %v727
        %v744 = vadd.f32 %v644, %v728
        %v745 = vadd.f32 %v645, %v729
        %v746 = vadd.f32 %v646, %v730
        %v747 = vadd.f32 %v647, %v731
        %v748 = vadd.f32 %v648, %v732
        %v749 = vadd.f32 %v649, %v733
        %v750 = vmax.f32 %v734, 0.0
        %v751 = vmax.f32 %v735, 0.0
        %v752 = vmax.f32 %v736, 0.0
        %v753 = vmax.f32 %v737, 0.0
        %v754 = vmax.f32 %v738, 0.0
        %v755 = vmax.f32 %v739, 0.0
        %v756 = vmax.f32 %v740, 0.0
        %v757 = vmax.f32 %v741, 0.0
        %v758 = vmax.f32 %v742, 0.0
        %v759 = vmax.f32 %v743, 0.0
        %v760 = vmax.f32 %v744, 0.0
        %v761 = vmax.f32 %v745, 0.0
        %v762 = vmax.f32 %v746, 0.0
        %v763 = vmax.f32 %v747, 0.0
        %v764 = vmax.f32 %v748, 0.0
        %v765 = vmax.f32 %v749, 0.0
        %v766 = vld [vmem:[%s3] sm:$0xff]
        %v767 = vld [vmem:[%s3 + $0x8] sm:$0xff]
        %v768 = vld [vmem:[%s3 + $0x10] sm:$0xff]
        %v769 = vld [vmem:[%s3 + $0x18] sm:$0xff]
        %v770 = vld [vmem:[%s3 + $0x20] sm:$0xff]
        %v771 = vld [vmem:[%s3 + $0x28] sm:$0xff]
        %v772 = vld [vmem:[%s3 + $0x30] sm:$0xff]
        %v773 = vld [vmem:[%s3 + $0x38] sm:$0xff]
        %v774 = vld [vmem:[%s3 + $0x40] sm:$0xff]
        %v775 = vld [vmem:[%s3 + $0x48] sm:$0xff]
        %v776 = vld [vmem:[%s3 + $0x50] sm:$0xff]
        %v777 = vld [vmem:[%s3 + $0x58] sm:$0xff]
        %v778 = vld [vmem:[%s3 + $0x60] sm:$0xff]
        %v779 = vld [vmem:[%s3 + $0x68] sm:$0xff]
        %v780 = vld [vmem:[%s3 + $0x70] sm:$0xff]
        %v781 = vld [vmem:[%s3 + $0x78] sm:$0xff]
        %783 = vset.pattern.permute.xlu0 0
        %784 = vperm.xlu0 %783, %v766
        %v785 = vpop.permute.xlu0 %784
        %788 = vset.pattern.permute.xlu0 0
        %789 = vperm.xlu0 %788, %v767
        %v790 = vpop.permute.xlu0 %789
        %793 = vset.pattern.permute.xlu0 0
        %794 = vperm.xlu0 %793, %v768
        %v795 = vpop.permute.xlu0 %794
        %798 = vset.pattern.permute.xlu0 0
        %799 = vperm.xlu0 %798, %v769
        %v800 = vpop.permute.xlu0 %799
        %803 = vset.pattern.permute.xlu0 0
        %804 = vperm.xlu0 %803, %v770
        %v805 = vpop.permute.xlu0 %804
        %808 = vset.pattern.permute.xlu0 0
        %809 = vperm.xlu0 %808, %v771
        %v810 = vpop.permute.xlu0 %809
        %813 = vset.pattern.permute.xlu0 0
        %814 = vperm.xlu0 %813, %v772
        %v815 = vpop.permute.xlu0 %814
        %818 = vset.pattern.permute.xlu0 0
        %819 = vperm.xlu0 %818, %v773
        %v820 = vpop.permute.xlu0 %819
        %823 = vset.pattern.permute.xlu0 0
        %824 = vperm.xlu0 %823, %v774
        %v825 = vpop.permute.xlu0 %824
        %828 = vset.pattern.permute.xlu0 0
        %829 = vperm.xlu0 %828, %v775
        %v830 = vpop.permute.xlu0 %829
        %833 = vset.pattern.permute.xlu0 0
        %834 = vperm.xlu0 %833, %v776
        %v835 = vpop.permute.xlu0 %834
        %838 = vset.pattern.permute.xlu0 0
        %839 = vperm.xlu0 %838, %v777
        %v840 = vpop.permute.xlu0 %839
        %843 = vset.pattern.permute.xlu0 0
        %844 = vperm.xlu0 %843, %v778
        %v845 = vpop.permute.xlu0 %844
        %848 = vset.pattern.permute.xlu0 0
        %849 = vperm.xlu0 %848, %v779
        %v850 = vpop.permute.xlu0 %849
        %853 = vset.pattern.permute.xlu0 0
        %854 = vperm.xlu0 %853, %v780
        %v855 = vpop.permute.xlu0 %854
        %858 = vset.pattern.permute.xlu0 0
        %859 = vperm.xlu0 %858, %v781
        %v860 = vpop.permute.xlu0 %859
        %v862 = vmul.f32 %v750, %v785
        %v863 = vmul.f32 %v751, %v790
        %v864 = vmul.f32 %v752, %v795
        %v865 = vmul.f32 %v753, %v800
        %v866 = vmul.f32 %v754, %v805
        %v867 = vmul.f32 %v755, %v810
        %v868 = vmul.f32 %v756, %v815
        %v869 = vmul.f32 %v757, %v820
        %v870 = vmul.f32 %v758, %v825
        %v871 = vmul.f32 %v759, %v830
        %v872 = vmul.f32 %v760, %v835
        %v873 = vmul.f32 %v761, %v840
        %v874 = vmul.f32 %v762, %v845
        %v875 = vmul.f32 %v763, %v850
        %v876 = vmul.f32 %v764, %v855
        %v877 = vmul.f32 %v765, %v860
        %v878 = vadd.f32 %v862, %v863
        %v879 = vadd.f32 %v878, %v864
        %v880 = vadd.f32 %v879, %v865
        %v881 = vadd.f32 %v880, %v866
        %v882 = vadd.f32 %v881, %v867
        %v883 = vadd.f32 %v882, %v868
        %v884 = vadd.f32 %v883, %v869
        %v885 = vadd.f32 %v884, %v870
        %v886 = vadd.f32 %v885, %v871
        %v887 = vadd.f32 %v886, %v872
        %v888 = vadd.f32 %v887, %v873
        %v889 = vadd.f32 %v888, %v874
        %v890 = vadd.f32 %v889, %v875
        %v891 = vadd.f32 %v890, %v876
        %v892 = vadd.f32 %v891, %v877
        %v893 = vrot.slane %v892, 4
        %v894 = vadd.f32 %v892, %v893
        %v895 = vrot.slane %v894, 2
        %v896 = vadd.f32 %v894, %v895
        %v897 = vrot.slane %v896, 1
        %v898 = vadd.f32 %v896, %v897
        %s899 = sld [smem:[#allocation2]]
        %v900 = vstv %s899
        %v901 = vadd.f32 %v898, %v900
        %v902 = vsub.f32 0.0, %v901
        %v903 = vmul.f32 %v902, 1.442695
        %v904 = vpow.pop %v903
        %v905 = vadd.f32 %v904, 1.0
        %v906 = vrcp.pop %v905
        %v907 = vmul.f32 1.0, %v906
        %v908 = vsub.f32 1.0, %v907
        %vm909 = vcmask 1040384
        %v910 = vsel %vm909, %v908, %v907
        %911 = vst [vmem:[%s216] sm:$0x3] %v910
        %s912 = sand.u32 %s138, 1
        %s913 = scalar_lea.sflag [#allocation4], %s912
        %s914 = sand.u32 %s138, 1
        %s915 = smul.addr %s914, 2
        %s916 = scalar_lea.vmem [#allocation3], %s915
        // Predicated region
        $region41: #{tpu_custom_call.1} parent=39 // pred_check
          %p917 = pneg %p148
        $region42: #{tpu_custom_call.1} parent=39 // pred_check_branch
          %919 = sbr.rel (%p917) target = $region44
        $region43: #{tpu_custom_call.1} parent=39 // pred_region
          %s921 = ssub.s32 32, 32
          %922 = vsyncadd %s913, %s921
          %s923 = smul.addr %s20, 32
          %s924 = scalar_lea.hbm %s5, %s923
          %s926 = sshll.u32 %s916, 4
          %s927 = int_to_ptr.vmem [resolvable:$true] %s926
          %929 = dma.vmem_to_hbm [thread:$0]  %s927, 32, %s924, %s913
        $region44: #{tpu_custom_call.1} parent=39 // pred_fallthru
          _
      $region40: #{tpu_custom_call.1} parent=5 // pred_fallthru
        _
      %p930 = scmp.le.s32.totalorder 2, %s15
      // Predicated region
      $region45: #{tpu_custom_call.1} parent=5 // pred_check
        %p931 = pneg %p930
      $region46: #{tpu_custom_call.1} parent=5 // pred_check_branch
        %933 = sbr.rel (%p931) target = $region48
      $region47: #{tpu_custom_call.1} parent=5 // pred_region
        %s934 = ssub.s32 %s15, 2
        // Predicated region
        $region49: #{tpu_custom_call.1} parent=47 // pred_check
          %p935 = pneg %p154
        $region50: #{tpu_custom_call.1} parent=47 // pred_check_branch
          %937 = sbr.rel (%p935) target = $region52
        $region51: #{tpu_custom_call.1} parent=47 // pred_region
          %s938 = sand.u32 %s139, 1
          %s939 = scalar_lea.sflag [#allocation4], %s938
          %s940 = sand.u32 %s139, 1
          %s941 = smul.addr %s940, 2
          %s942 = scalar_lea.vmem [#allocation3], %s941
          %943 = dma.done %s939, 32
        $region52: #{tpu_custom_call.1} parent=47 // pred_fallthru
          _
      $region48: #{tpu_custom_call.1} parent=5 // pred_fallthru
        _
    $region6: #{tpu_custom_call.1} parent=1 // loop_footer
      %s19 = sadd.s32 1, %s15
    $region7: #{tpu_custom_call.1} parent=1 // loop_footer_branch
      %14 = sbr.rel target = $region3
    $region8: #{tpu_custom_call.1} parent=1 // loop_exit
      _
    %944 = vsyncpa [#allocation4], 1
    %s945 = scalar_lea.sflag [#allocation4], 1
    %946 = vsyncpa %s945, 1

</llo_original>
